<compile_context>
chip_gen: v7x
topology: tpu7x:2x2x1
jax: 0.10.0
libtpu: 0.0.40
codegen_flags: <defaults>
</compile_context>

<pallas_src>
import jax
import jax.numpy as jnp
from jax.experimental import pallas as pl
from jax.experimental.pallas import tpu as pltpu

# ----- model sizes -----------------------------------------------------------
B = 8            # batch
IN_DIM = 32      # per-encoder input feature size
ENC_DIM = 16     # per-encoder output size
N_PAIR_OUT = 4   # 2 encoders x 2 outputs each (it's a *pair* scorer)
ENC_OUT = N_PAIR_OUT * ENC_DIM          # 64 = computeListOutputSize(encoders)
H1, H2 = 32, 16                         # hiddenSizes
X_COLS = N_PAIR_OUT * IN_DIM            # 128: packed input width (one vreg)

# ----- packed parameter slab layout (row offsets, all multiples of 8) --------
P_COLS = 128
W_ENC_R = 0        # (128, 64) block-diagonal encoder weights
W1_R = 128         # (64, 32)
W2_R = 192         # (32, 16)
B_ENC_R = 224      # (1, 64)   [be1 | be1 | be2 | be2]
B1_R = 232         # (1, 32)
B2_R = 240         # (1, 16)
W3T_R = 248        # (1, 16)   w3 transposed (row vector)
B3_R = 256         # (1, 1)
P_ROWS = 264       # 264 x 128 x 4B ~= 132 KiB -> one DMA, trivially fits VMEM


def scorer_kernel(x_ref, p_ref, out_ref):
    f32 = jnp.float32
    x = x_ref[...]                                            # (B, 128)

    # -- all 4 encoder applications + torch.cat in ONE MXU push ---------------
    w_enc = p_ref[W_ENC_R:W_ENC_R + X_COLS, 0:ENC_OUT]        # (128, 64)
    b_enc = p_ref[B_ENC_R:B_ENC_R + 1, 0:ENC_OUT]             # (1, 64)
    e = jnp.tanh(jnp.dot(x, w_enc, preferred_element_type=f32) + b_enc)

    # -- Linear(ENC_OUT, H1) + ReLU (hiddenActClass) ---------------------------
    w1 = p_ref[W1_R:W1_R + ENC_OUT, 0:H1]                     # (64, 32)
    b1 = p_ref[B1_R:B1_R + 1, 0:H1]                           # (1, 32)
    h = jnp.maximum(jnp.dot(e, w1, preferred_element_type=f32) + b1, 0.0)

    # -- Linear(H1, H2) + ReLU --------------------------------------------------
    w2 = p_ref[W2_R:W2_R + H1, 0:H2]                          # (32, 16)
    b2 = p_ref[B2_R:B2_R + 1, 0:H2]                           # (1, 16)
    h = jnp.maximum(jnp.dot(h, w2, preferred_element_type=f32) + b2, 0.0)

    # -- Linear(H2, 1) + Sigmoid, emitted lane-dense as (1, B) ------------------
    w3t = p_ref[W3T_R:W3T_R + 1, 0:H2]                        # (1, 16)
    b3 = p_ref[B3_R:B3_R + 1, 0:1]                            # (1, 1)
    logit = jnp.dot(w3t, h.T, preferred_element_type=f32) + b3   # (1, B)
    out_ref[...] = jax.nn.sigmoid(logit)


# ----- wrapper-side packing (layout plumbing, done outside the kernel) -------
def pack_inputs(encoder_inputs):
    """((xa1, xb1), (xa2, xb2)) -> one (B, 4*IN_DIM) lane-dense slab."""
    (xa1, xb1), (xa2, xb2) = encoder_inputs
    return jnp.concatenate([xa1, xb1, xa2, xb2], axis=1)      # (B, 128)


def pack_params(params):
    """Pack all weights/biases into one (P_ROWS, 128) f32 slab (done once)."""
    we1, we2 = params["we1"], params["we2"]
    # Block-diagonal encoder weight: x_packed @ w_enc == [ea1|eb1|ea2|eb2]
    # pre-activation; the zero blocks contribute exact zeros, so this is
    # mathematically identical to applying each encoder then concatenating.
    w_enc = jnp.zeros((X_COLS, ENC_OUT), jnp.float32)
    w_enc = w_enc.at[0 * IN_DIM:1 * IN_DIM, 0 * ENC_DIM:1 * ENC_DIM].set(we1)
    w_enc = w_enc.at[1 * IN_DIM:2 * IN_DIM, 1 * ENC_DIM:2 * ENC_DIM].set(we1)
    w_enc = w_enc.at[2 * IN_DIM:3 * IN_DIM, 2 * ENC_DIM:3 * ENC_DIM].set(we2)
    w_enc = w_enc.at[3 * IN_DIM:4 * IN_DIM, 3 * ENC_DIM:4 * ENC_DIM].set(we2)
    b_enc = jnp.concatenate([params["be1"], params["be1"],
                             params["be2"], params["be2"]], axis=1)  # (1, 64)

    p = jnp.zeros((P_ROWS, P_COLS), jnp.float32)
    p = p.at[W_ENC_R:W_ENC_R + X_COLS, 0:ENC_OUT].set(w_enc)
    p = p.at[W1_R:W1_R + ENC_OUT, 0:H1].set(params["w1"])
    p = p.at[W2_R:W2_R + H1, 0:H2].set(params["w2"])
    p = p.at[B_ENC_R:B_ENC_R + 1, 0:ENC_OUT].set(b_enc)
    p = p.at[B1_R:B1_R + 1, 0:H1].set(params["b1"])
    p = p.at[B2_R:B2_R + 1, 0:H2].set(params["b2"])
    p = p.at[W3T_R:W3T_R + 1, 0:H2].set(params["w3"].T)
    p = p.at[B3_R:B3_R + 1, 0:1].set(params["b3"])
    return p


def multi_layer_scorer_pair(x_packed, packed_params):
    """Forward pass; returns shape (B,) scores (== x.squeeze() in PyTorch)."""
    vmem = pl.BlockSpec(memory_space=pltpu.MemorySpace.VMEM)
    out = pl.pallas_call(
        scorer_kernel,
        out_shape=jax.ShapeDtypeStruct((1, B), jnp.float32),  # lane-dense
        in_specs=[vmem, vmem],
        out_specs=vmem,
    )(x_packed, packed_params)
    return out[0]                                             # (B,)


# ----- parameter init (nn.Linear-style uniform) -------------------------------
def init_params(key):
    ks = jax.random.split(key, 5)

    def lin(k, fan_in, fan_out):
        bound = 1.0 / jnp.sqrt(jnp.float32(fan_in))
        kw, kb = jax.random.split(k)
        w = jax.random.uniform(kw, (fan_in, fan_out), jnp.float32, -bound, bound)
        b = jax.random.uniform(kb, (1, fan_out), jnp.float32, -bound, bound)
        return w, b

    we1, be1 = lin(ks[0], IN_DIM, ENC_DIM)
    we2, be2 = lin(ks[1], IN_DIM, ENC_DIM)
    w1, b1 = lin(ks[2], ENC_OUT, H1)
    w2, b2 = lin(ks[3], H1, H2)
    w3, b3 = lin(ks[4], H2, 1)
    return dict(we1=we1, be1=be1, we2=we2, be2=be2,
                w1=w1, b1=b1, w2=w2, b2=b2, w3=w3, b3=b3)


# ----- pure-JAX reference of the module's forward -----------------------------
def reference(encoder_inputs, params):
    hi = jax.lax.Precision.HIGHEST
    (xa1, xb1), (xa2, xb2) = encoder_inputs
    ea1 = jnp.tanh(jnp.dot(xa1, params["we1"], precision=hi) + params["be1"])
    eb1 = jnp.tanh(jnp.dot(xb1, params["we1"], precision=hi) + params["be1"])
    ea2 = jnp.tanh(jnp.dot(xa2, params["we2"], precision=hi) + params["be2"])
    eb2 = jnp.tanh(jnp.dot(xb2, params["we2"], precision=hi) + params["be2"])
    x = jnp.concatenate([ea1, eb1, ea2, eb2], axis=1)         # torch.cat(_, 1)
    h = jnp.maximum(jnp.dot(x, params["w1"], precision=hi) + params["b1"], 0.0)
    h = jnp.maximum(jnp.dot(h, params["w2"], precision=hi) + params["b2"], 0.0)
    out = jax.nn.sigmoid(jnp.dot(h, params["w3"], precision=hi) + params["b3"])
    return jnp.squeeze(out)


if __name__ == "__main__":
    key = jax.random.PRNGKey(0)
    k_in, k_par = jax.random.split(key)
    ki = jax.random.split(k_in, 4)

    xa1 = jax.random.normal(ki[0], (B, IN_DIM), jnp.float32)
    xb1 = jax.random.normal(ki[1], (B, IN_DIM), jnp.float32)
    xa2 = jax.random.normal(ki[2], (B, IN_DIM), jnp.float32)
    xb2 = jax.random.normal(ki[3], (B, IN_DIM), jnp.float32)
    encoder_inputs = ((xa1, xb1), (xa2, xb2))

    params = init_params(k_par)

    # pack once (wrapper-side layout plumbing), 2 DMAs total inside the kernel
    x_packed = pack_inputs(encoder_inputs)       # (8, 128)
    p_packed = pack_params(params)               # (264, 128)

    scores = multi_layer_scorer_pair(x_packed, p_packed)
    jax.block_until_ready(scores)

    assert scores.shape == (B,), scores.shape
    assert bool(jnp.all((scores >= 0.0) & (scores <= 1.0)))   # sigmoid range

    ref_scores = reference(encoder_inputs, params)
    assert bool(jnp.allclose(scores, ref_scores, atol=1e-4, rtol=1e-4)), (
        scores, ref_scores)

    print("KERNEL_OK")
</pallas_src>

<mosaic_0001>
module attributes {stable_mosaic.version = 11 : i64} {
  func.func @scorer_kernel(%arg0: memref<8x128xf32, #tpu.memory_space<vmem>>, %arg1: memref<264x128xf32, #tpu.memory_space<vmem>>, %arg2: memref<1x8xf32, #tpu.memory_space<vmem>>) attributes {dimension_semantics = [], scalar_prefetch = 0 : i64, scratch_operands = 0 : i64, tpu.core_type = #tpu.core_type<tc>} {
    %c0 = arith.constant 0 : index
    %c0_0 = arith.constant 0 : index
    %0 = vector.load %arg0[%c0, %c0_0] : memref<8x128xf32, #tpu.memory_space<vmem>>, vector<8x128xf32>
    %c0_1 = arith.constant 0 : index
    %c0_2 = arith.constant 0 : index
    %1 = vector.load %arg1[%c0_1, %c0_2] : memref<264x128xf32, #tpu.memory_space<vmem>>, vector<128x64xf32>
    %c224 = arith.constant 224 : index
    %c0_3 = arith.constant 0 : index
    %2 = vector.load %arg1[%c224, %c0_3] : memref<264x128xf32, #tpu.memory_space<vmem>>, vector<1x64xf32>
    %cst = arith.constant dense<0.000000e+00> : vector<8x64xf32>
    %3 = tpu.matmul %0, %1, %cst {dimension_numbers = #tpu.dot_dimension_numbers<[1], [0], [0], [1], [0, 0, 1, 1], [], []>} : vector<8x128xf32>, vector<128x64xf32>, vector<8x64xf32> -> vector<8x64xf32>
    %4 = vector.broadcast %2 : vector<1x64xf32> to vector<8x64xf32>
    %5 = arith.addf %3, %4 : vector<8x64xf32>
    %6 = math.tanh %5 : vector<8x64xf32>
    %c128 = arith.constant 128 : index
    %c0_4 = arith.constant 0 : index
    %7 = vector.load %arg1[%c128, %c0_4] : memref<264x128xf32, #tpu.memory_space<vmem>>, vector<64x32xf32>
    %c232 = arith.constant 232 : index
    %c0_5 = arith.constant 0 : index
    %8 = vector.load %arg1[%c232, %c0_5] : memref<264x128xf32, #tpu.memory_space<vmem>>, vector<1x32xf32>
    %cst_6 = arith.constant dense<0.000000e+00> : vector<8x32xf32>
    %9 = tpu.matmul %6, %7, %cst_6 {dimension_numbers = #tpu.dot_dimension_numbers<[1], [0], [0], [1], [0, 0, 1, 1], [], []>} : vector<8x64xf32>, vector<64x32xf32>, vector<8x32xf32> -> vector<8x32xf32>
    %10 = vector.broadcast %8 : vector<1x32xf32> to vector<8x32xf32>
    %11 = arith.addf %9, %10 : vector<8x32xf32>
    %cst_7 = arith.constant 0.000000e+00 : f32
    %12 = vector.broadcast %cst_7 : f32 to vector<8x32xf32>
    %13 = arith.maximumf %11, %12 : vector<8x32xf32>
    %c192 = arith.constant 192 : index
    %c0_8 = arith.constant 0 : index
    %14 = vector.load %arg1[%c192, %c0_8] : memref<264x128xf32, #tpu.memory_space<vmem>>, vector<32x16xf32>
    %c240 = arith.constant 240 : index
    %c0_9 = arith.constant 0 : index
    %15 = vector.load %arg1[%c240, %c0_9] : memref<264x128xf32, #tpu.memory_space<vmem>>, vector<1x16xf32>
    %cst_10 = arith.constant dense<0.000000e+00> : vector<8x16xf32>
    %16 = tpu.matmul %13, %14, %cst_10 {dimension_numbers = #tpu.dot_dimension_numbers<[1], [0], [0], [1], [0, 0, 1, 1], [], []>} : vector<8x32xf32>, vector<32x16xf32>, vector<8x16xf32> -> vector<8x16xf32>
    %17 = vector.broadcast %15 : vector<1x16xf32> to vector<8x16xf32>
    %18 = arith.addf %16, %17 : vector<8x16xf32>
    %cst_11 = arith.constant 0.000000e+00 : f32
    %19 = vector.broadcast %cst_11 : f32 to vector<8x16xf32>
    %20 = arith.maximumf %18, %19 : vector<8x16xf32>
    %c248 = arith.constant 248 : index
    %c0_12 = arith.constant 0 : index
    %21 = vector.load %arg1[%c248, %c0_12] : memref<264x128xf32, #tpu.memory_space<vmem>>, vector<1x16xf32>
    %c256 = arith.constant 256 : index
    %c0_13 = arith.constant 0 : index
    %22 = vector.load %arg1[%c256, %c0_13] : memref<264x128xf32, #tpu.memory_space<vmem>>, vector<1x1xf32>
    %23 = tpu.transpose %20, [1, 0] : vector<8x16xf32> -> vector<16x8xf32>
    %cst_14 = arith.constant dense<0.000000e+00> : vector<1x8xf32>
    %24 = tpu.matmul %21, %23, %cst_14 {dimension_numbers = #tpu.dot_dimension_numbers<[1], [0], [0], [1], [0, 0, 1, 1], [], []>} : vector<1x16xf32>, vector<16x8xf32>, vector<1x8xf32> -> vector<1x8xf32>
    %25 = vector.broadcast %22 : vector<1x1xf32> to vector<1x8xf32>
    %26 = arith.addf %24, %25 : vector<1x8xf32>
    %27 = arith.negf %26 : vector<1x8xf32>
    %28 = math.exp %27 : vector<1x8xf32>
    %cst_15 = arith.constant 1.000000e+00 : f32
    %29 = vector.broadcast %cst_15 : f32 to vector<1x8xf32>
    %30 = arith.addf %29, %28 : vector<1x8xf32>
    %31 = arith.divf %29, %30 : vector<1x8xf32>
    %c0_16 = arith.constant 0 : index
    %c0_17 = arith.constant 0 : index
    %32 = vector.load %arg2[%c0_16, %c0_17] : memref<1x8xf32, #tpu.memory_space<vmem>>, vector<1x8xf32>
    tpu.vector_store %arg2[%c0_16, %c0_17], %31 {strides = array<i32>} : memref<1x8xf32, #tpu.memory_space<vmem>>, vector<1x8xf32>,
    return
  }
}

</mosaic_0001>

<llo_original>
// kernel: tpu_custom_call.1
$region0: #{tpu_custom_call.1}
  #allocation0 [shape = 'u32[]', space=smem, size = 0x4, offset = 0x4, fixed_abs, tag = 'smem constant byte address 0x4 - core index']
  #allocation1 [shape = 'u32[144,128]{1,0:T(1,128)}', space=vmem, size = 0x12000, scoped, tag = 'internal scratch']
  %s0 = inlined_call_operand.hbm [shape: f32[8,128], index: 0, kind: input, shape index: {}]
  %s1 = inlined_call_operand.hbm [shape: f32[264,128], index: 1, kind: input, shape index: {}]
  %s2 = inlined_call_operand.hbm [shape: f32[1,8], index: 2, kind: output, shape index: {}]
  %s3 = sld [smem:[#allocation0]]
  $region26: #{tpu_custom_call.1} parent=0
    _
  %s5 = ssub.s32 1, %s3
  %s6 = scalar_select 0, %s5, %s3
  $region1: #{tpu_custom_call.1} parent=0
    #allocation2 [shape = 'u8[4096]{0}', space=vmem, size = 0x1000, scoped, tag = 'input window, operand 0, single buffered']
    #allocation3 [shape = 's32[1]{0}', space=sflag, size = 0x4, scoped, tag = 'scoped memory for tpu_custom_call.1']
    #allocation4 [shape = 's32[1]{0}', space=sflag, size = 0x4, scoped, tag = 'scoped memory for tpu_custom_call.1']
    #allocation5 [shape = 'u8[135168]{0}', space=vmem, size = 0x21000, scoped, tag = 'input window, operand 1, single buffered']
    #allocation6 [shape = 's32[1]{0}', space=sflag, size = 0x4, scoped, tag = 'scoped memory for tpu_custom_call.1']
    #allocation7 [shape = 'u8[512]{0}', space=vmem, size = 0x400, scoped, tag = 'output window, operand 0, single buffered']
    %7 = vsyncpa [#allocation3], 0
    %8 = vsyncpa [#allocation6], 0
    %9 = vsyncpa [#allocation4], 0
    // Predicated region
    $region2: #{tpu_custom_call.1} parent=1 // pred_check
      _
    $region3: #{tpu_custom_call.1} parent=1 // pred_check_branch
      %11 = sbr.rel (0) target = $region5
    $region4: #{tpu_custom_call.1} parent=1 // pred_region
      %s13 = ssub.s32 128, 128
      %14 = vsyncadd [#allocation3], %s13
      %s16 = sshll.u32 [#allocation2], 4
      %s17 = int_to_ptr.vmem [resolvable:$true] %s16
      %19 = dma.hbm_to_vmem [thread:$0]  %s0, 128, %s17, [#allocation3]
    $region5: #{tpu_custom_call.1} parent=1 // pred_fallthru
      _
    // Predicated region
    $region6: #{tpu_custom_call.1} parent=1 // pred_check
      _
    $region7: #{tpu_custom_call.1} parent=1 // pred_check_branch
      %21 = sbr.rel (0) target = $region9
    $region8: #{tpu_custom_call.1} parent=1 // pred_region
      %s23 = ssub.s32 4224, 4224
      %24 = vsyncadd [#allocation6], %s23
      %s25 = sshll.u32 [#allocation5], 4
      %s26 = int_to_ptr.vmem [resolvable:$true] %s25
      %31 = dma.hbm_to_vmem [thread:$0]  %s1, 4224, %s26, [#allocation6], 128, 128, 8
    $region9: #{tpu_custom_call.1} parent=1 // pred_fallthru
      _
    // Predicated region
    $region10: #{tpu_custom_call.1} parent=1 // pred_check
      _
    $region11: #{tpu_custom_call.1} parent=1 // pred_check_branch
      %33 = sbr.rel (0) target = $region13
    $region12: #{tpu_custom_call.1} parent=1 // pred_region
      %34 = dma.done [#allocation3], 128
    $region13: #{tpu_custom_call.1} parent=1 // pred_fallthru
      _
    // Predicated region
    $region14: #{tpu_custom_call.1} parent=1 // pred_check
      _
    $region15: #{tpu_custom_call.1} parent=1 // pred_check_branch
      %36 = sbr.rel (0) target = $region17
    $region16: #{tpu_custom_call.1} parent=1 // pred_region
      %37 = dma.done [#allocation6], 4224
    $region17: #{tpu_custom_call.1} parent=1 // pred_fallthru
      _
    %v38 = vld [vmem:[#allocation2] sm:$0xff]
    %v39 = vld [vmem:[#allocation5] sm:$0xff]
    %v40 = vld [vmem:[#allocation5 + $0x8] sm:$0xff]
    %v41 = vld [vmem:[#allocation5 + $0x10] sm:$0xff]
    %v42 = vld [vmem:[#allocation5 + $0x18] sm:$0xff]
    %v43 = vld [vmem:[#allocation5 + $0x20] sm:$0xff]
    %v44 = vld [vmem:[#allocation5 + $0x28] sm:$0xff]
    %v45 = vld [vmem:[#allocation5 + $0x30] sm:$0xff]
    %v46 = vld [vmem:[#allocation5 + $0x38] sm:$0xff]
    %v47 = vld [vmem:[#allocation5 + $0x40] sm:$0xff]
    %v48 = vld [vmem:[#allocation5 + $0x48] sm:$0xff]
    %v49 = vld [vmem:[#allocation5 + $0x50] sm:$0xff]
    %v50 = vld [vmem:[#allocation5 + $0x58] sm:$0xff]
    %v51 = vld [vmem:[#allocation5 + $0x60] sm:$0xff]
    %v52 = vld [vmem:[#allocation5 + $0x68] sm:$0xff]
    %v53 = vld [vmem:[#allocation5 + $0x70] sm:$0xff]
    %v54 = vld [vmem:[#allocation5 + $0x78] sm:$0xff]
    %v55 = vld [vmem:[#allocation5 + $0xe0] sm:$0x1]
    %v56 = vlaneseq
    %v57 = vshrl.u32 %v56, 7
    %v58 = vsub.s32 0, %v57
    %v59 = vrot.slane %v55, %v58
    %60 = vmatprep.subr.mxu0 0.0
    %61 = vmatpush1.msra.mxu0 %v39
    %62 = vmatprep.subr.mxu0 0.0
    %63 = vmatpush1.msra.mxu0 %v40
    %64 = vmatprep.subr.mxu0 0.0
    %65 = vmatpush1.msra.mxu0 %v41
    %66 = vmatprep.subr.mxu0 0.0
    %67 = vmatpush1.msra.mxu0 %v42
    %68 = vmatprep.subr.mxu0 0.0
    %69 = vmatpush1.msra.mxu0 %v43
    %70 = vmatprep.subr.mxu0 0.0
    %71 = vmatpush1.msra.mxu0 %v44
    %72 = vmatprep.subr.mxu0 0.0
    %73 = vmatpush1.msra.mxu0 %v45
    %74 = vmatprep.subr.mxu0 0.0
    %75 = vmatpush1.msra.mxu0 %v46
    %76 = vmatprep.subr.mxu0 0.0
    %77 = vmatpush1.msra.mxu0 %v47
    %78 = vmatprep.subr.mxu0 0.0
    %79 = vmatpush1.msra.mxu0 %v48
    %80 = vmatprep.subr.mxu0 0.0
    %81 = vmatpush1.msra.mxu0 %v49
    %82 = vmatprep.subr.mxu0 0.0
    %83 = vmatpush1.msra.mxu0 %v50
    %84 = vmatprep.subr.mxu0 0.0
    %85 = vmatpush1.msra.mxu0 %v51
    %86 = vmatprep.subr.mxu0 0.0
    %87 = vmatpush1.msra.mxu0 %v52
    %88 = vmatprep.subr.mxu0 0.0
    %89 = vmatpush1.msra.mxu0 %v53
    %90 = vmatprep.subr.mxu0 0.0
    %91 = vmatpush1.msra.mxu0 %v54
    %92 = vmatprep.subr.mxu0 0.0
    %93 = vmatpush1.msra.mxu0 0.0
    %94 = vmatprep.subr.mxu0 0.0
    %95 = vmatpush1.msra.mxu0 0.0
    %96 = vmatprep.subr.mxu0 0.0
    %97 = vmatpush1.msra.mxu0 0.0
    %98 = vmatprep.subr.mxu0 0.0
    %99 = vmatpush1.msra.mxu0 0.0
    %100 = vmatprep.subr.mxu0 0.0
    %101 = vmatpush1.msra.mxu0 0.0
    %102 = vmatprep.subr.mxu0 0.0
    %103 = vmatpush1.msra.mxu0 0.0
    %104 = vmatprep.subr.mxu0 0.0
    %105 = vmatpush1.msra.mxu0 0.0
    %106 = vmatprep.subr.mxu0 0.0
    %107 = vmatpush1.msra.mxu0 0.0
    %108 = vmatprep.subr.mxu0 0.0
    %109 = vmatpush1.msra.mxu0 0.0
    %110 = vmatprep.subr.mxu0 0.0
    %111 = vmatpush1.msra.mxu0 0.0
    %112 = vmatprep.subr.mxu0 0.0
    %113 = vmatpush1.msra.mxu0 0.0
    %114 = vmatprep.subr.mxu0 0.0
    %115 = vmatpush1.msra.mxu0 0.0
    %116 = vmatprep.subr.mxu0 0.0
    %117 = vmatpush1.msra.mxu0 0.0
    %118 = vmatprep.subr.mxu0 0.0
    %119 = vmatpush1.msra.mxu0 0.0
    %120 = vmatprep.subr.mxu0 0.0
    %121 = vmatpush1.msra.mxu0 0.0
    %122 = vmatprep.subr.mxu0 0.0
    %123 = vmatpush1.msra.mxu0 0.0
    %124 = vmatprep.mubr.f32.mxu0 0.0
    %125 = vmatmul.mubr.f32.gmra.mrb[0].mxu0 %v38
    %v126 = vpop.f32.mrb[0].mxu0
    %v127 = vadd.f32 %v59, %v126
    %v128 = vpop.f32.mrb[0].mxu0
    %129 = vdwg.mxu0
    %v130 = vtanh.pop %v127
    %v131 = vld [vmem:[#allocation5 + $0x80] sm:$0xff]
    %v132 = vld [vmem:[#allocation5 + $0x88] sm:$0xff]
    %v133 = vld [vmem:[#allocation5 + $0x90] sm:$0xff]
    %v134 = vld [vmem:[#allocation5 + $0x98] sm:$0xff]
    %v135 = vld [vmem:[#allocation5 + $0xa0] sm:$0xff]
    %v136 = vld [vmem:[#allocation5 + $0xa8] sm:$0xff]
    %v137 = vld [vmem:[#allocation5 + $0xb0] sm:$0xff]
    %v138 = vld [vmem:[#allocation5 + $0xb8] sm:$0xff]
    %v139 = vld [vmem:[#allocation5 + $0xe8] sm:$0x1]
    %v140 = vlaneseq
    %v141 = vshrl.u32 %v140, 7
    %v142 = vsub.s32 0, %v141
    %v143 = vrot.slane %v139, %v142
    %vm144 = vcmask 523264
    %v146 = vsel %vm144, %v130, 0
    %148 = vmatprep.subr.mxu0 0.0
    %149 = vmatpush1.msra.mxu0 %v131
    %150 = vmatprep.subr.mxu0 0.0
    %151 = vmatpush1.msra.mxu0 %v132
    %152 = vmatprep.subr.mxu0 0.0
    %153 = vmatpush1.msra.mxu0 %v133
    %154 = vmatprep.subr.mxu0 0.0
    %155 = vmatpush1.msra.mxu0 %v134
    %156 = vmatprep.subr.mxu0 0.0
    %157 = vmatpush1.msra.mxu0 %v135
    %158 = vmatprep.subr.mxu0 0.0
    %159 = vmatpush1.msra.mxu0 %v136
    %160 = vmatprep.subr.mxu0 0.0
    %161 = vmatpush1.msra.mxu0 %v137
    %162 = vmatprep.subr.mxu0 0.0
    %163 = vmatpush1.msra.mxu0 %v138
    %164 = vmatprep.subr.mxu0 0.0
    %165 = vmatpush1.msra.mxu0 0.0
    %166 = vmatprep.subr.mxu0 0.0
    %167 = vmatpush1.msra.mxu0 0.0
    %168 = vmatprep.subr.mxu0 0.0
    %169 = vmatpush1.msra.mxu0 0.0
    %170 = vmatprep.subr.mxu0 0.0
    %171 = vmatpush1.msra.mxu0 0.0
    %172 = vmatprep.subr.mxu0 0.0
    %173 = vmatpush1.msra.mxu0 0.0
    %174 = vmatprep.subr.mxu0 0.0
    %175 = vmatpush1.msra.mxu0 0.0
    %176 = vmatprep.subr.mxu0 0.0
    %177 = vmatpush1.msra.mxu0 0.0
    %178 = vmatprep.subr.mxu0 0.0
    %179 = vmatpush1.msra.mxu0 0.0
    %180 = vmatprep.subr.mxu0 0.0
    %181 = vmatpush1.msra.mxu0 0.0
    %182 = vmatprep.subr.mxu0 0.0
    %183 = vmatpush1.msra.mxu0 0.0
    %184 = vmatprep.subr.mxu0 0.0
    %185 = vmatpush1.msra.mxu0 0.0
    %186 = vmatprep.subr.mxu0 0.0
    %187 = vmatpush1.msra.mxu0 0.0
    %188 = vmatprep.subr.mxu0 0.0
    %189 = vmatpush1.msra.mxu0 0.0
    %190 = vmatprep.subr.mxu0 0.0
    %191 = vmatpush1.msra.mxu0 0.0
    %192 = vmatprep.subr.mxu0 0.0
    %193 = vmatpush1.msra.mxu0 0.0
    %194 = vmatprep.subr.mxu0 0.0
    %195 = vmatpush1.msra.mxu0 0.0
    %196 = vmatprep.subr.mxu0 0.0
    %197 = vmatpush1.msra.mxu0 0.0
    %198 = vmatprep.subr.mxu0 0.0
    %199 = vmatpush1.msra.mxu0 0.0
    %200 = vmatprep.subr.mxu0 0.0
    %201 = vmatpush1.msra.mxu0 0.0
    %202 = vmatprep.subr.mxu0 0.0
    %203 = vmatpush1.msra.mxu0 0.0
    %204 = vmatprep.subr.mxu0 0.0
    %205 = vmatpush1.msra.mxu0 0.0
    %206 = vmatprep.subr.mxu0 0.0
    %207 = vmatpush1.msra.mxu0 0.0
    %208 = vmatprep.subr.mxu0 0.0
    %209 = vmatpush1.msra.mxu0 0.0
    %210 = vmatprep.subr.mxu0 0.0
    %211 = vmatpush1.msra.mxu0 0.0
    %212 = vmatprep.mubr.f32.mxu0 0.0
    %213 = vmatmul.mubr.f32.gmra.mrb[0].mxu0 %v146
    %v214 = vpop.f32.mrb[0].mxu0
    %v215 = vadd.f32 %v143, %v214
    %v216 = vpop.f32.mrb[0].mxu0
    %217 = vdwg.mxu0
    %v218 = vmax.f32 %v215, 0.0
    %v219 = vld [vmem:[#allocation5 + $0xc0] sm:$0xff]
    %v220 = vld [vmem:[#allocation5 + $0xc8] sm:$0xff]
    %v221 = vld [vmem:[#allocation5 + $0xd0] sm:$0xff]
    %v222 = vld [vmem:[#allocation5 + $0xd8] sm:$0xff]
    %v223 = vld [vmem:[#allocation5 + $0xf0] sm:$0x1]
    %v224 = vlaneseq
    %v225 = vshrl.u32 %v224, 7
    %v226 = vsub.s32 0, %v225
    %v227 = vrot.slane %v223, %v226
    %vm228 = vcmask 261120
    %v230 = vsel %vm228, %v218, 0
    %232 = vmatprep.subr.mxu0 0.0
    %233 = vmatpush1.msra.mxu0 %v219
    %234 = vmatprep.subr.mxu0 0.0
    %235 = vmatpush1.msra.mxu0 %v220
    %236 = vmatprep.subr.mxu0 0.0
    %237 = vmatpush1.msra.mxu0 %v221
    %238 = vmatprep.subr.mxu0 0.0
    %239 = vmatpush1.msra.mxu0 %v222
    %240 = vmatprep.subr.mxu0 0.0
    %241 = vmatpush1.msra.mxu0 0.0
    %242 = vmatprep.subr.mxu0 0.0
    %243 = vmatpush1.msra.mxu0 0.0
    %244 = vmatprep.subr.mxu0 0.0
    %245 = vmatpush1.msra.mxu0 0.0
    %246 = vmatprep.subr.mxu0 0.0
    %247 = vmatpush1.msra.mxu0 0.0
    %248 = vmatprep.subr.mxu0 0.0
    %249 = vmatpush1.msra.mxu0 0.0
    %250 = vmatprep.subr.mxu0 0.0
    %251 = vmatpush1.msra.mxu0 0.0
    %252 = vmatprep.subr.mxu0 0.0
    %253 = vmatpush1.msra.mxu0 0.0
    %254 = vmatprep.subr.mxu0 0.0
    %255 = vmatpush1.msra.mxu0 0.0
    %256 = vmatprep.subr.mxu0 0.0
    %257 = vmatpush1.msra.mxu0 0.0
    %258 = vmatprep.subr.mxu0 0.0
    %259 = vmatpush1.msra.mxu0 0.0
    %260 = vmatprep.subr.mxu0 0.0
    %261 = vmatpush1.msra.mxu0 0.0
    %262 = vmatprep.subr.mxu0 0.0
    %263 = vmatpush1.msra.mxu0 0.0
    %264 = vmatprep.subr.mxu0 0.0
    %265 = vmatpush1.msra.mxu0 0.0
    %266 = vmatprep.subr.mxu0 0.0
    %267 = vmatpush1.msra.mxu0 0.0
    %268 = vmatprep.subr.mxu0 0.0
    %269 = vmatpush1.msra.mxu0 0.0
    %270 = vmatprep.subr.mxu0 0.0
    %271 = vmatpush1.msra.mxu0 0.0
    %272 = vmatprep.subr.mxu0 0.0
    %273 = vmatpush1.msra.mxu0 0.0
    %274 = vmatprep.subr.mxu0 0.0
    %275 = vmatpush1.msra.mxu0 0.0
    %276 = vmatprep.subr.mxu0 0.0
    %277 = vmatpush1.msra.mxu0 0.0
    %278 = vmatprep.subr.mxu0 0.0
    %279 = vmatpush1.msra.mxu0 0.0
    %280 = vmatprep.subr.mxu0 0.0
    %281 = vmatpush1.msra.mxu0 0.0
    %282 = vmatprep.subr.mxu0 0.0
    %283 = vmatpush1.msra.mxu0 0.0
    %284 = vmatprep.subr.mxu0 0.0
    %285 = vmatpush1.msra.mxu0 0.0
    %286 = vmatprep.subr.mxu0 0.0
    %287 = vmatpush1.msra.mxu0 0.0
    %288 = vmatprep.subr.mxu0 0.0
    %289 = vmatpush1.msra.mxu0 0.0
    %290 = vmatprep.subr.mxu0 0.0
    %291 = vmatpush1.msra.mxu0 0.0
    %292 = vmatprep.subr.mxu0 0.0
    %293 = vmatpush1.msra.mxu0 0.0
    %294 = vmatprep.subr.mxu0 0.0
    %295 = vmatpush1.msra.mxu0 0.0
    %296 = vmatprep.mubr.f32.mxu0 0.0
    %297 = vmatmul.mubr.f32.gmra.mrb[0].mxu0 %v230
    %v298 = vpop.f32.mrb[0].mxu0
    %v299 = vadd.f32 %v227, %v298
    %v300 = vpop.f32.mrb[0].mxu0
    %301 = vdwg.mxu0
    %v302 = vmax.f32 %v299, 0.0
    %v303 = vld [vmem:[#allocation5 + $0xf8] sm:$0x1]
    %v304 = vld [vmem:[#allocation5 + $0x100] sm:$0x1]
    %306 = vset.pattern.permute.xlu0 0
    %307 = vperm.xlu0 %306, %v304
    %v308 = vpop.permute.xlu0 %307
    %vm310 = vcmask 130048
    %v312 = vsel %vm310, %v303, 0
    %v315 = vsel %vm310, %v302, 0
    %317 = vmatprep.subr.mxu0 0.0
    %318 = vmatpush1.xpose.msra.mxu0 %v315
    %319 = vmatprep.subr.mxu0 0.0
    %320 = vmatpush1.xpose.msra.mxu0 0.0
    %321 = vmatprep.subr.mxu0 0.0
    %322 = vmatpush1.xpose.msra.mxu0 0.0
    %323 = vmatprep.subr.mxu0 0.0
    %324 = vmatpush1.xpose.msra.mxu0 0.0
    %325 = vmatprep.subr.mxu0 0.0
    %326 = vmatpush1.xpose.msra.mxu0 0.0
    %327 = vmatprep.subr.mxu0 0.0
    %328 = vmatpush1.xpose.msra.mxu0 0.0
    %329 = vmatprep.subr.mxu0 0.0
    %330 = vmatpush1.xpose.msra.mxu0 0.0
    %331 = vmatprep.subr.mxu0 0.0
    %332 = vmatpush1.xpose.msra.mxu0 0.0
    %333 = vmatprep.subr.mxu0 0.0
    %334 = vmatpush1.xpose.msra.mxu0 0.0
    %335 = vmatprep.subr.mxu0 0.0
    %336 = vmatpush1.xpose.msra.mxu0 0.0
    %337 = vmatprep.subr.mxu0 0.0
    %338 = vmatpush1.xpose.msra.mxu0 0.0
    %339 = vmatprep.subr.mxu0 0.0
    %340 = vmatpush1.xpose.msra.mxu0 0.0
    %341 = vmatprep.subr.mxu0 0.0
    %342 = vmatpush1.xpose.msra.mxu0 0.0
    %343 = vmatprep.subr.mxu0 0.0
    %344 = vmatpush1.xpose.msra.mxu0 0.0
    %345 = vmatprep.subr.mxu0 0.0
    %346 = vmatpush1.xpose.msra.mxu0 0.0
    %347 = vmatprep.subr.mxu0 0.0
    %348 = vmatpush1.xpose.msra.mxu0 0.0
    %349 = vmatprep.subr.mxu0 0.0
    %350 = vmatpush1.xpose.msra.mxu0 0.0
    %351 = vmatprep.subr.mxu0 0.0
    %352 = vmatpush1.xpose.msra.mxu0 0.0
    %353 = vmatprep.subr.mxu0 0.0
    %354 = vmatpush1.xpose.msra.mxu0 0.0
    %355 = vmatprep.subr.mxu0 0.0
    %356 = vmatpush1.xpose.msra.mxu0 0.0
    %357 = vmatprep.subr.mxu0 0.0
    %358 = vmatpush1.xpose.msra.mxu0 0.0
    %359 = vmatprep.subr.mxu0 0.0
    %360 = vmatpush1.xpose.msra.mxu0 0.0
    %361 = vmatprep.subr.mxu0 0.0
    %362 = vmatpush1.xpose.msra.mxu0 0.0
    %363 = vmatprep.subr.mxu0 0.0
    %364 = vmatpush1.xpose.msra.mxu0 0.0
    %365 = vmatprep.subr.mxu0 0.0
    %366 = vmatpush1.xpose.msra.mxu0 0.0
    %367 = vmatprep.subr.mxu0 0.0
    %368 = vmatpush1.xpose.msra.mxu0 0.0
    %369 = vmatprep.subr.mxu0 0.0
    %370 = vmatpush1.xpose.msra.mxu0 0.0
    %371 = vmatprep.subr.mxu0 0.0
    %372 = vmatpush1.xpose.msra.mxu0 0.0
    %373 = vmatprep.subr.mxu0 0.0
    %374 = vmatpush1.xpose.msra.mxu0 0.0
    %375 = vmatprep.subr.mxu0 0.0
    %376 = vmatpush1.xpose.msra.mxu0 0.0
    %377 = vmatprep.subr.mxu0 0.0
    %378 = vmatpush1.xpose.msra.mxu0 0.0
    %379 = vmatprep.subr.mxu0 0.0
    %380 = vmatpush1.xpose.msra.mxu0 0.0
    %381 = vmatprep.mubr.f32.mxu0 0.0
    %382 = vmatmul.mubr.f32.gmra.mrb[0].mxu0 %v312
    %v383 = vpop.f32.mrb[0].mxu0
    %v384 = vadd.f32 %v308, %v383
    %v385 = vpop.f32.mrb[0].mxu0
    %386 = vdwg.mxu0
    %v387 = vxor.u32 %v384, 2147483648
    %v388 = vmul.f32 %v387, 1.442695
    %v389 = vpow.pop %v388
    %v390 = vadd.f32 %v389, 1.0
    %v391 = vrcp.pop %v390
    %v392 = vmul.f32 1.0, %v391
    %vm393 = vcmask 57344
    %394 = vst.msk [vmem:[#allocation7] sm:$0x1] %vm393, %v392
    // Predicated region
    $region18: #{tpu_custom_call.1} parent=1 // pred_check
      _
    $region19: #{tpu_custom_call.1} parent=1 // pred_check_branch
      %396 = sbr.rel (0) target = $region21
    $region20: #{tpu_custom_call.1} parent=1 // pred_region
      %s398 = ssub.s32 16, 16
      %399 = vsyncadd [#allocation4], %s398
      %s401 = sshll.u32 [#allocation7], 4
      %s402 = int_to_ptr.vmem [resolvable:$true] %s401
      %404 = dma.vmem_to_hbm [thread:$0]  %s402, 16, %s2, [#allocation4]
    $region21: #{tpu_custom_call.1} parent=1 // pred_fallthru
      _
    // Predicated region
    $region22: #{tpu_custom_call.1} parent=1 // pred_check
      _
    $region23: #{tpu_custom_call.1} parent=1 // pred_check_branch
      %406 = sbr.rel (0) target = $region25
    $region24: #{tpu_custom_call.1} parent=1 // pred_region
      %407 = dma.done [#allocation4], 16
    $region25: #{tpu_custom_call.1} parent=1 // pred_fallthru
      _
    %408 = vsyncpa [#allocation3], 1
    %409 = vsyncpa [#allocation6], 1
    %410 = vsyncpa [#allocation4], 1

</llo_original>
